<compile_context>
chip_gen: v7x
topology: tpu7x:2x2x1
jax: 0.10.0
libtpu: 0.0.40
codegen_flags: <defaults>
</compile_context>

<pallas_src>
import jax
import jax.numpy as jnp
from jax import lax
from jax.experimental import pallas as pl
from jax.experimental.pallas import tpu as pltpu


def _round_up(x: int, m: int) -> int:
    return ((x + m - 1) // m) * m


def _linear_kernel(x_ref, w_ref, b_ref, o_ref, acc_ref):
    # x_ref: (TILE_B, TILE_K)   w_ref: (N_PAD, TILE_K)   b_ref: (1, N_PAD)
    # o_ref: (TILE_B, N_PAD)    acc_ref: (TILE_B, N_PAD) f32 scratch
    k_step = pl.program_id(1)

    @pl.when(k_step == 0)
    def _():
        acc_ref[...] = jnp.zeros_like(acc_ref)

    # Contract on the last dims (x @ W^T) without ever materializing W^T.
    acc_ref[...] += lax.dot_general(
        x_ref[...],
        w_ref[...],
        dimension_numbers=(((1,), (1,)), ((), ())),
        preferred_element_type=jnp.float32,
    )

    @pl.when(k_step == pl.num_programs(1) - 1)
    def _():
        # Single epilogue: bias add + cast only once, lane-dense (N_PAD) store.
        o_ref[...] = (acc_ref[...] + b_ref[...]).astype(o_ref.dtype)


def linear_classifier_forward(x, weight, bias, *, compute_dtype=jnp.bfloat16):
    """Forward pass of LinearClassifier.

    Args:
        x: (b, 3, H, W) float32 image batch (NCHW, same as PyTorch).
        weight: (num_classes, 3*H*W) float32, native nn.Linear layout (NOT transposed).
        bias: (num_classes,) float32.
        compute_dtype: dtype the matmul operands are streamed in (bf16 by default;
            accumulation is always f32).

    Returns:
        (b, num_classes) float32 logits.
    """
    b = x.shape[0]
    k = x.shape[1] * x.shape[2] * x.shape[3]
    n = weight.shape[0]

    x_flat = x.reshape(b, k)  # row-major flatten == torch.nn.Flatten

    # ---- tile sizing -------------------------------------------------------
    n_pad = _round_up(n, 128)                       # lane-dense output width
    tile_b = 256 if b >= 256 else _round_up(b, 8)   # sublane-aligned batch tile
    b_pad = _round_up(b, tile_b)
    tile_k = min(4096, _round_up(k, 128))           # bounded K tile (fits v7x VMEM)
    k_pad = _round_up(k, tile_k)

    # ---- pad + cast (zero padding does not change the matmul result) ------
    # NOTE: in a real model the padded/cast weight+bias would be prepared once
    # at parameter-init time instead of per call.
    x_p = jnp.zeros((b_pad, k_pad), compute_dtype).at[:b, :k].set(
        x_flat.astype(compute_dtype))
    w_p = jnp.zeros((n_pad, k_pad), compute_dtype).at[:n, :k].set(
        weight.astype(compute_dtype))
    bias_p = jnp.zeros((1, n_pad), jnp.float32).at[0, :n].set(
        bias.astype(jnp.float32))

    grid = (b_pad // tile_b, k_pad // tile_k)  # (batch tiles, K tiles) — K innermost

    out_padded = pl.pallas_call(
        _linear_kernel,
        out_shape=jax.ShapeDtypeStruct((b_pad, n_pad), jnp.float32),
        grid=grid,
        in_specs=[
            pl.BlockSpec((tile_b, tile_k), lambda i, kk: (i, kk)),   # x
            pl.BlockSpec((n_pad, tile_k), lambda i, kk: (0, kk)),    # weight (N, K)
            pl.BlockSpec((1, n_pad), lambda i, kk: (0, 0)),          # bias
        ],
        out_specs=pl.BlockSpec((tile_b, n_pad), lambda i, kk: (i, 0)),
        scratch_shapes=[pltpu.VMEM((tile_b, n_pad), jnp.float32)],
        compiler_params=pltpu.CompilerParams(
            # batch axis can be sharded across TensorCores (v7x); K is a reduction.
            dimension_semantics=("parallel", "arbitrary"),
            vmem_limit_bytes=32 * 1024 * 1024,
        ),
    )(x_p, w_p, bias_p)

    return out_padded[:b, :n]


if __name__ == "__main__":
    # Small shapes consistent with the module: 3 channels (hard-coded by the
    # module), H=W=16 -> in_features = 3*16*16 = 768, num_classes = 6.
    batch, channels, H, W = 2, 3, 16, 16
    num_classes = 6
    in_features = channels * H * W

    key = jax.random.PRNGKey(0)
    kx, kw, kb = jax.random.split(key, 3)

    # Deterministic init mimicking nn.Linear's default U(-1/sqrt(K), 1/sqrt(K)).
    bound = 1.0 / jnp.sqrt(jnp.float32(in_features))
    weight = jax.random.uniform(
        kw, (num_classes, in_features), jnp.float32, -bound, bound)
    bias = jax.random.uniform(kb, (num_classes,), jnp.float32, -bound, bound)
    x = jax.random.normal(kx, (batch, channels, H, W), jnp.float32)

    # bf16-streamed path (default, halves HBM traffic) and exact f32 path.
    logits_bf16 = linear_classifier_forward(x, weight, bias)
    logits_f32 = linear_classifier_forward(
        x, weight, bias, compute_dtype=jnp.float32)
    jax.block_until_ready((logits_bf16, logits_f32))

    ref = x.reshape(batch, in_features) @ weight.T + bias
    assert logits_f32.shape == (batch, num_classes)
    assert logits_bf16.shape == (batch, num_classes)
    assert jnp.allclose(logits_f32, ref, atol=1e-4, rtol=1e-4)
    assert jnp.allclose(logits_bf16, ref, atol=2e-2, rtol=2e-2)

    print("KERNEL_OK")
</pallas_src>

<mosaic_0001>
module attributes {stable_mosaic.version = 11 : i64} {
  func.func @_linear_kernel(%arg0: i32, %arg1: i32, %arg2: memref<8x768xbf16, #tpu.memory_space<vmem>>, %arg3: memref<128x768xbf16, #tpu.memory_space<vmem>>, %arg4: memref<1x128xf32, #tpu.memory_space<vmem>>, %arg5: memref<8x128xf32, #tpu.memory_space<vmem>>, %arg6: memref<8x128xf32, #tpu.memory_space<vmem>>) attributes {dimension_semantics = [#tpu.dimension_semantics<parallel>, #tpu.dimension_semantics<arbitrary>], iteration_bounds = array<i64: 1, 1>, scalar_prefetch = 0 : i64, scratch_operands = 1 : i64, tpu.core_type = #tpu.core_type<tc>, window_params = [{transform_indices = @transform_0, window_bounds = array<i64: 8, 768>}, {transform_indices = @transform_1, window_bounds = array<i64: 128, 768>}, {pipeline_mode = #tpu.pipeline_mode<synchronous>, transform_indices = @transform_2, window_bounds = array<i64: 1, 128>}, {transform_indices = @transform_3, window_bounds = array<i64: 8, 128>}]} {
    %c0_i32 = arith.constant 0 : i32
    %0 = arith.cmpi eq, %arg1, %c0_i32 : i32
    %1 = arith.extui %0 : i1 to i32
    %c0_i32_0 = arith.constant 0 : i32
    %2 = arith.cmpi ne, %1, %c0_i32_0 : i32
    scf.if %2 {
      %cst_10 = arith.constant 0.000000e+00 : f32
      %12 = vector.broadcast %cst_10 : f32 to vector<8x128xf32>
      %c0_11 = arith.constant 0 : index
      %c0_12 = arith.constant 0 : index
      %13 = vector.load %arg6[%c0_11, %c0_12] : memref<8x128xf32, #tpu.memory_space<vmem>>, vector<8x128xf32>
      tpu.vector_store %arg6[%c0_11, %c0_12], %12 {strides = array<i32>} : memref<8x128xf32, #tpu.memory_space<vmem>>, vector<8x128xf32>,
    } else {
    }
    %c0 = arith.constant 0 : index
    %c0_1 = arith.constant 0 : index
    %3 = vector.load %arg6[%c0, %c0_1] : memref<8x128xf32, #tpu.memory_space<vmem>>, vector<8x128xf32>
    %c0_2 = arith.constant 0 : index
    %c0_3 = arith.constant 0 : index
    %4 = vector.load %arg2[%c0_2, %c0_3] : memref<8x768xbf16, #tpu.memory_space<vmem>>, vector<8x768xbf16>
    %c0_4 = arith.constant 0 : index
    %c0_5 = arith.constant 0 : index
    %5 = vector.load %arg3[%c0_4, %c0_5] : memref<128x768xbf16, #tpu.memory_space<vmem>>, vector<128x768xbf16>
    %cst = arith.constant dense<0.000000e+00> : vector<8x128xf32>
    %6 = tpu.matmul %4, %5, %cst {dimension_numbers = #tpu.dot_dimension_numbers<[1], [1], [0], [0], [0, 0, 1, 0], [], []>} : vector<8x768xbf16>, vector<128x768xbf16>, vector<8x128xf32> -> vector<8x128xf32>
    %7 = arith.addf %3, %6 : vector<8x128xf32>
    %c0_6 = arith.constant 0 : index
    %c0_7 = arith.constant 0 : index
    %8 = vector.load %arg6[%c0_6, %c0_7] : memref<8x128xf32, #tpu.memory_space<vmem>>, vector<8x128xf32>
    tpu.vector_store %arg6[%c0_6, %c0_7], %7 {strides = array<i32>} : memref<8x128xf32, #tpu.memory_space<vmem>>, vector<8x128xf32>,
    %c0_i32_8 = arith.constant 0 : i32
    %9 = arith.cmpi eq, %arg1, %c0_i32_8 : i32
    %10 = arith.extui %9 : i1 to i32
    %c0_i32_9 = arith.constant 0 : i32
    %11 = arith.cmpi ne, %10, %c0_i32_9 : i32
    scf.if %11 {
      %c0_10 = arith.constant 0 : index
      %c0_11 = arith.constant 0 : index
      %12 = vector.load %arg6[%c0_10, %c0_11] : memref<8x128xf32, #tpu.memory_space<vmem>>, vector<8x128xf32>
      %c0_12 = arith.constant 0 : index
      %c0_13 = arith.constant 0 : index
      %13 = vector.load %arg4[%c0_12, %c0_13] : memref<1x128xf32, #tpu.memory_space<vmem>>, vector<1x128xf32>
      %14 = vector.broadcast %13 : vector<1x128xf32> to vector<8x128xf32>
      %15 = arith.addf %12, %14 : vector<8x128xf32>
      %c0_14 = arith.constant 0 : index
      %c0_15 = arith.constant 0 : index
      %16 = vector.load %arg5[%c0_14, %c0_15] : memref<8x128xf32, #tpu.memory_space<vmem>>, vector<8x128xf32>
      tpu.vector_store %arg5[%c0_14, %c0_15], %15 {strides = array<i32>} : memref<8x128xf32, #tpu.memory_space<vmem>>, vector<8x128xf32>,
    } else {
    }
    return
  }
  func.func @transform_0(%arg0: i32, %arg1: i32) -> (i32, i32) {
    %c0_i32 = arith.constant 0 : i32
    return %arg0, %arg1 : i32, i32
  }
  func.func @transform_1(%arg0: i32, %arg1: i32) -> (i32, i32) {
    %c0_i32 = arith.constant 0 : i32
    %c0_i32_0 = arith.constant 0 : i32
    return %c0_i32, %arg1 : i32, i32
  }
  func.func @transform_2(%arg0: i32, %arg1: i32) -> (i32, i32) {
    %c0_i32 = arith.constant 0 : i32
    %c0_i32_0 = arith.constant 0 : i32
    %c0_i32_1 = arith.constant 0 : i32
    return %c0_i32, %c0_i32_0 : i32, i32
  }
  func.func @transform_3(%arg0: i32, %arg1: i32) -> (i32, i32) {
    %c0_i32 = arith.constant 0 : i32
    %c0_i32_0 = arith.constant 0 : i32
    return %arg0, %c0_i32 : i32, i32
  }
}

</mosaic_0001>

<llo_original>
// kernel: tpu_custom_call.1
$region0: #{tpu_custom_call.1}
  #allocation0 [shape = 'u32[]', space=smem, size = 0x4, offset = 0x4, fixed_abs, tag = 'smem constant byte address 0x4 - core index']
  #allocation1 [shape = 'u32[144,128]{1,0:T(1,128)}', space=vmem, size = 0x12000, scoped, tag = 'internal scratch']
  #allocation2 [shape = 'f32[8,128]{1,0:T(8,128)}', space=vmem, size = 0x1000, scoped, tag = 'scratch operand']
  %s0 = inlined_call_operand.hbm [shape: bf16[8,768], index: 0, kind: input, shape index: {}]
  %s1 = inlined_call_operand.hbm [shape: bf16[128,768], index: 1, kind: input, shape index: {}]
  %s2 = inlined_call_operand.vmem [shape: f32[1,128], index: 2, kind: input, shape index: {}]
  %s3 = inlined_call_operand.hbm [shape: f32[8,128], index: 3, kind: output, shape index: {}]
  %s4 = sld [smem:[#allocation0]]
  $region38: #{tpu_custom_call.1} parent=0
    _
  %s6 = ssub.s32 1, %s4
  %s7 = scalar_select 0, %s6, %s4
  $region1: #{tpu_custom_call.1} parent=0
    #allocation3 [shape = 'u8[12288]{0}', space=vmem, size = 0x3000, scoped, tag = 'input window, operand 0, single buffered']
    #allocation4 [shape = 's32[1]{0}', space=sflag, size = 0x4, scoped, tag = 'scoped memory for tpu_custom_call.1']
    #allocation5 [shape = 's32[1]{0}', space=sflag, size = 0x4, scoped, tag = 'scoped memory for tpu_custom_call.1']
    #allocation6 [shape = 'u8[196608]{0}', space=vmem, size = 0x30000, scoped, tag = 'input window, operand 1, single buffered']
    #allocation7 [shape = 's32[1]{0}', space=sflag, size = 0x4, scoped, tag = 'scoped memory for tpu_custom_call.1']
    #allocation8 [shape = 'u8[4096]{0}', space=vmem, size = 0x1000, scoped, tag = 'output window, operand 0, single buffered']
    %8 = vsyncpa [#allocation4], 0
    %9 = vsyncpa [#allocation7], 0
    %10 = vsyncpa [#allocation5], 0
    // Predicated region
    $region2: #{tpu_custom_call.1} parent=1 // pred_check
      _
    $region3: #{tpu_custom_call.1} parent=1 // pred_check_branch
      %12 = sbr.rel (0) target = $region5
    $region4: #{tpu_custom_call.1} parent=1 // pred_region
      %s14 = ssub.s32 384, 384
      %15 = vsyncadd [#allocation4], %s14
      %s17 = sshll.u32 [#allocation3], 4
      %s18 = int_to_ptr.vmem [resolvable:$true] %s17
      %20 = dma.hbm_to_vmem [thread:$0]  %s0, 384, %s18, [#allocation4]
    $region5: #{tpu_custom_call.1} parent=1 // pred_fallthru
      _
    // Predicated region
    $region6: #{tpu_custom_call.1} parent=1 // pred_check
      _
    $region7: #{tpu_custom_call.1} parent=1 // pred_check_branch
      %22 = sbr.rel (0) target = $region9
    $region8: #{tpu_custom_call.1} parent=1 // pred_region
      %s24 = ssub.s32 6144, 6144
      %25 = vsyncadd [#allocation7], %s24
      %s26 = sshll.u32 [#allocation6], 4
      %s27 = int_to_ptr.vmem [resolvable:$true] %s26
      %32 = dma.hbm_to_vmem [thread:$0]  %s1, 6144, %s27, [#allocation7], 384, 384, 24
    $region9: #{tpu_custom_call.1} parent=1 // pred_fallthru
      _
    // Predicated region
    $region10: #{tpu_custom_call.1} parent=1 // pred_check
      _
    $region11: #{tpu_custom_call.1} parent=1 // pred_check_branch
      %34 = sbr.rel (0) target = $region13
    $region12: #{tpu_custom_call.1} parent=1 // pred_region
      _
    $region13: #{tpu_custom_call.1} parent=1 // pred_fallthru
      _
    // Predicated region
    $region14: #{tpu_custom_call.1} parent=1 // pred_check
      _
    $region15: #{tpu_custom_call.1} parent=1 // pred_check_branch
      %36 = sbr.rel (0) target = $region17
    $region16: #{tpu_custom_call.1} parent=1 // pred_region
      %37 = dma.done [#allocation4], 384
    $region17: #{tpu_custom_call.1} parent=1 // pred_fallthru
      _
    // Predicated region
    $region18: #{tpu_custom_call.1} parent=1 // pred_check
      _
    $region19: #{tpu_custom_call.1} parent=1 // pred_check_branch
      %39 = sbr.rel (0) target = $region21
    $region20: #{tpu_custom_call.1} parent=1 // pred_region
      %40 = dma.done [#allocation7], 6144
    $region21: #{tpu_custom_call.1} parent=1 // pred_fallthru
      _
    %p42 = scmp.eq.s32.totalorder 0, 0
    // Predicated region
    $region22: #{tpu_custom_call.1} parent=1 // pred_check
      %p43 = pneg %p42
    $region23: #{tpu_custom_call.1} parent=1 // pred_check_branch
      %45 = sbr.rel (%p43) target = $region25
    $region24: #{tpu_custom_call.1} parent=1 // pred_region
      %46 = vst [vmem:[#allocation2] sm:$0xff] 0.0
    $region25: #{tpu_custom_call.1} parent=1 // pred_fallthru
      _
    %v47 = vld [vmem:[#allocation2] sm:$0xff]
    %v48 = vld [vmem:[#allocation3] sm:$0xff]
    %v49 = vld [vmem:[#allocation3 + $0x8] sm:$0xff]
    %v50 = vld [vmem:[#allocation3 + $0x10] sm:$0xff]
    %v51 = vld [vmem:[#allocation6] sm:$0xff]
    %v52 = vld [vmem:[#allocation6 + $0x8] sm:$0xff]
    %v53 = vld [vmem:[#allocation6 + $0x10] sm:$0xff]
    %v54 = vld [vmem:[#allocation6 + $0x18] sm:$0xff]
    %v55 = vld [vmem:[#allocation6 + $0x20] sm:$0xff]
    %v56 = vld [vmem:[#allocation6 + $0x28] sm:$0xff]
    %v57 = vld [vmem:[#allocation6 + $0x30] sm:$0xff]
    %v58 = vld [vmem:[#allocation6 + $0x38] sm:$0xff]
    %v59 = vld [vmem:[#allocation6 + $0x40] sm:$0xff]
    %v60 = vld [vmem:[#allocation6 + $0x48] sm:$0xff]
    %v61 = vld [vmem:[#allocation6 + $0x50] sm:$0xff]
    %v62 = vld [vmem:[#allocation6 + $0x58] sm:$0xff]
    %v63 = vld [vmem:[#allocation6 + $0x60] sm:$0xff]
    %v64 = vld [vmem:[#allocation6 + $0x68] sm:$0xff]
    %v65 = vld [vmem:[#allocation6 + $0x70] sm:$0xff]
    %v66 = vld [vmem:[#allocation6 + $0x78] sm:$0xff]
    %v67 = vld [vmem:[#allocation6 + $0x80] sm:$0xff]
    %v68 = vld [vmem:[#allocation6 + $0x88] sm:$0xff]
    %v69 = vld [vmem:[#allocation6 + $0x90] sm:$0xff]
    %v70 = vld [vmem:[#allocation6 + $0x98] sm:$0xff]
    %v71 = vld [vmem:[#allocation6 + $0xa0] sm:$0xff]
    %v72 = vld [vmem:[#allocation6 + $0xa8] sm:$0xff]
    %v73 = vld [vmem:[#allocation6 + $0xb0] sm:$0xff]
    %v74 = vld [vmem:[#allocation6 + $0xb8] sm:$0xff]
    %v75 = vld [vmem:[#allocation6 + $0xc0] sm:$0xff]
    %v76 = vld [vmem:[#allocation6 + $0xc8] sm:$0xff]
    %v77 = vld [vmem:[#allocation6 + $0xd0] sm:$0xff]
    %v78 = vld [vmem:[#allocation6 + $0xd8] sm:$0xff]
    %v79 = vld [vmem:[#allocation6 + $0xe0] sm:$0xff]
    %v80 = vld [vmem:[#allocation6 + $0xe8] sm:$0xff]
    %v81 = vld [vmem:[#allocation6 + $0xf0] sm:$0xff]
    %v82 = vld [vmem:[#allocation6 + $0xf8] sm:$0xff]
    %v83 = vld [vmem:[#allocation6 + $0x100] sm:$0xff]
    %v84 = vld [vmem:[#allocation6 + $0x108] sm:$0xff]
    %v85 = vld [vmem:[#allocation6 + $0x110] sm:$0xff]
    %v86 = vld [vmem:[#allocation6 + $0x118] sm:$0xff]
    %v87 = vld [vmem:[#allocation6 + $0x120] sm:$0xff]
    %v88 = vld [vmem:[#allocation6 + $0x128] sm:$0xff]
    %v89 = vld [vmem:[#allocation6 + $0x130] sm:$0xff]
    %v90 = vld [vmem:[#allocation6 + $0x138] sm:$0xff]
    %v91 = vld [vmem:[#allocation6 + $0x140] sm:$0xff]
    %v92 = vld [vmem:[#allocation6 + $0x148] sm:$0xff]
    %v93 = vld [vmem:[#allocation6 + $0x150] sm:$0xff]
    %v94 = vld [vmem:[#allocation6 + $0x158] sm:$0xff]
    %v95 = vld [vmem:[#allocation6 + $0x160] sm:$0xff]
    %v96 = vld [vmem:[#allocation6 + $0x168] sm:$0xff]
    %v97 = vld [vmem:[#allocation6 + $0x170] sm:$0xff]
    %v98 = vld [vmem:[#allocation6 + $0x178] sm:$0xff]
    %v102 = vunpack.c.l.b16 %v48
    %v103 = vunpack.c.h.b16 %v48
    %v104 = vunpack.c.l.b16 %v49
    %v105 = vunpack.c.h.b16 %v49
    %v106 = vunpack.c.l.b16 %v50
    %v107 = vunpack.c.h.b16 %v50
    %v108 = vpack.c.b16 %v102, %v102
    %v109 = vpack.c.b16 %v103, %v103
    %v110 = vpack.c.b16 %v104, %v104
    %v111 = vpack.c.b16 %v105, %v105
    %v112 = vpack.c.b16 %v106, %v106
    %v113 = vpack.c.b16 %v107, %v107
    %v168 = vunpack.c.l.b16 %v51
    %v169 = vunpack.c.h.b16 %v51
    %v170 = vunpack.c.l.b16 %v52
    %v171 = vunpack.c.h.b16 %v52
    %v172 = vunpack.c.l.b16 %v53
    %v173 = vunpack.c.h.b16 %v53
    %v174 = vunpack.c.l.b16 %v54
    %v175 = vunpack.c.h.b16 %v54
    %v176 = vunpack.c.l.b16 %v55
    %v177 = vunpack.c.h.b16 %v55
    %v178 = vunpack.c.l.b16 %v56
    %v179 = vunpack.c.h.b16 %v56
    %v180 = vunpack.c.l.b16 %v57
    %v181 = vunpack.c.h.b16 %v57
    %v182 = vunpack.c.l.b16 %v58
    %v183 = vunpack.c.h.b16 %v58
    %v184 = vunpack.c.l.b16 %v59
    %v185 = vunpack.c.h.b16 %v59
    %v186 = vunpack.c.l.b16 %v60
    %v187 = vunpack.c.h.b16 %v60
    %v188 = vunpack.c.l.b16 %v61
    %v189 = vunpack.c.h.b16 %v61
    %v190 = vunpack.c.l.b16 %v62
    %v191 = vunpack.c.h.b16 %v62
    %v192 = vunpack.c.l.b16 %v63
    %v193 = vunpack.c.h.b16 %v63
    %v194 = vunpack.c.l.b16 %v64
    %v195 = vunpack.c.h.b16 %v64
    %v196 = vunpack.c.l.b16 %v65
    %v197 = vunpack.c.h.b16 %v65
    %v198 = vunpack.c.l.b16 %v66
    %v199 = vunpack.c.h.b16 %v66
    %v200 = vunpack.c.l.b16 %v67
    %v201 = vunpack.c.h.b16 %v67
    %v202 = vunpack.c.l.b16 %v68
    %v203 = vunpack.c.h.b16 %v68
    %v204 = vunpack.c.l.b16 %v69
    %v205 = vunpack.c.h.b16 %v69
    %v206 = vunpack.c.l.b16 %v70
    %v207 = vunpack.c.h.b16 %v70
    %v208 = vunpack.c.l.b16 %v71
    %v209 = vunpack.c.h.b16 %v71
    %v210 = vunpack.c.l.b16 %v72
    %v211 = vunpack.c.h.b16 %v72
    %v212 = vunpack.c.l.b16 %v73
    %v213 = vunpack.c.h.b16 %v73
    %v214 = vunpack.c.l.b16 %v74
    %v215 = vunpack.c.h.b16 %v74
    %v216 = vunpack.c.l.b16 %v75
    %v217 = vunpack.c.h.b16 %v75
    %v218 = vunpack.c.l.b16 %v76
    %v219 = vunpack.c.h.b16 %v76
    %v220 = vunpack.c.l.b16 %v77
    %v221 = vunpack.c.h.b16 %v77
    %v222 = vunpack.c.l.b16 %v78
    %v223 = vunpack.c.h.b16 %v78
    %v224 = vunpack.c.l.b16 %v79
    %v225 = vunpack.c.h.b16 %v79
    %v226 = vunpack.c.l.b16 %v80
    %v227 = vunpack.c.h.b16 %v80
    %v228 = vunpack.c.l.b16 %v81
    %v229 = vunpack.c.h.b16 %v81
    %v230 = vunpack.c.l.b16 %v82
    %v231 = vunpack.c.h.b16 %v82
    %v232 = vunpack.c.l.b16 %v83
    %v233 = vunpack.c.h.b16 %v83
    %v234 = vunpack.c.l.b16 %v84
    %v235 = vunpack.c.h.b16 %v84
    %v236 = vunpack.c.l.b16 %v85
    %v237 = vunpack.c.h.b16 %v85
    %v238 = vunpack.c.l.b16 %v86
    %v239 = vunpack.c.h.b16 %v86
    %v240 = vunpack.c.l.b16 %v87
    %v241 = vunpack.c.h.b16 %v87
    %v242 = vunpack.c.l.b16 %v88
    %v243 = vunpack.c.h.b16 %v88
    %v244 = vunpack.c.l.b16 %v89
    %v245 = vunpack.c.h.b16 %v89
    %v246 = vunpack.c.l.b16 %v90
    %v247 = vunpack.c.h.b16 %v90
    %v248 = vunpack.c.l.b16 %v91
    %v249 = vunpack.c.h.b16 %v91
    %v250 = vunpack.c.l.b16 %v92
    %v251 = vunpack.c.h.b16 %v92
    %v252 = vunpack.c.l.b16 %v93
    %v253 = vunpack.c.h.b16 %v93
    %v254 = vunpack.c.l.b16 %v94
    %v255 = vunpack.c.h.b16 %v94
    %v256 = vunpack.c.l.b16 %v95
    %v257 = vunpack.c.h.b16 %v95
    %v258 = vunpack.c.l.b16 %v96
    %v259 = vunpack.c.h.b16 %v96
    %v260 = vunpack.c.l.b16 %v97
    %v261 = vunpack.c.h.b16 %v97
    %v262 = vunpack.c.l.b16 %v98
    %v263 = vunpack.c.h.b16 %v98
    %v264 = vpack.c.b16 %v174, %v168
    %v265 = vpack.c.b16 %v175, %v169
    %v266 = vpack.c.b16 %v176, %v170
    %v267 = vpack.c.b16 %v177, %v171
    %v268 = vpack.c.b16 %v178, %v172
    %v269 = vpack.c.b16 %v179, %v173
    %v270 = vpack.c.b16 %v186, %v180
    %v271 = vpack.c.b16 %v187, %v181
    %v272 = vpack.c.b16 %v188, %v182
    %v273 = vpack.c.b16 %v189, %v183
    %v274 = vpack.c.b16 %v190, %v184
    %v275 = vpack.c.b16 %v191, %v185
    %v276 = vpack.c.b16 %v198, %v192
    %v277 = vpack.c.b16 %v199, %v193
    %v278 = vpack.c.b16 %v200, %v194
    %v279 = vpack.c.b16 %v201, %v195
    %v280 = vpack.c.b16 %v202, %v196
    %v281 = vpack.c.b16 %v203, %v197
    %v282 = vpack.c.b16 %v210, %v204
    %v283 = vpack.c.b16 %v211, %v205
    %v284 = vpack.c.b16 %v212, %v206
    %v285 = vpack.c.b16 %v213, %v207
    %v286 = vpack.c.b16 %v214, %v208
    %v287 = vpack.c.b16 %v215, %v209
    %v288 = vpack.c.b16 %v222, %v216
    %v289 = vpack.c.b16 %v223, %v217
    %v290 = vpack.c.b16 %v224, %v218
    %v291 = vpack.c.b16 %v225, %v219
    %v292 = vpack.c.b16 %v226, %v220
    %v293 = vpack.c.b16 %v227, %v221
    %v294 = vpack.c.b16 %v234, %v228
    %v295 = vpack.c.b16 %v235, %v229
    %v296 = vpack.c.b16 %v236, %v230
    %v297 = vpack.c.b16 %v237, %v231
    %v298 = vpack.c.b16 %v238, %v232
    %v299 = vpack.c.b16 %v239, %v233
    %v300 = vpack.c.b16 %v246, %v240
    %v301 = vpack.c.b16 %v247, %v241
    %v302 = vpack.c.b16 %v248, %v242
    %v303 = vpack.c.b16 %v249, %v243
    %v304 = vpack.c.b16 %v250, %v244
    %v305 = vpack.c.b16 %v251, %v245
    %v306 = vpack.c.b16 %v258, %v252
    %v307 = vpack.c.b16 %v259, %v253
    %v308 = vpack.c.b16 %v260, %v254
    %v309 = vpack.c.b16 %v261, %v255
    %v310 = vpack.c.b16 %v262, %v256
    %v311 = vpack.c.b16 %v263, %v257
    %360 = vmatprep.subr.bf16.mxu0 %v265
    %361 = vmatpush1.bf16.xpose.msra.mxu0 %v264
    %362 = vmatprep.subr.bf16.mxu0 %v271
    %363 = vmatpush1.bf16.xpose.msra.mxu0 %v270
    %364 = vmatprep.subr.bf16.mxu0 %v277
    %365 = vmatpush1.bf16.xpose.msra.mxu0 %v276
    %366 = vmatprep.subr.bf16.mxu0 %v283
    %367 = vmatpush1.bf16.xpose.msra.mxu0 %v282
    %368 = vmatprep.subr.bf16.mxu0 %v289
    %369 = vmatpush1.bf16.xpose.msra.mxu0 %v288
    %370 = vmatprep.subr.bf16.mxu0 %v295
    %371 = vmatpush1.bf16.xpose.msra.mxu0 %v294
    %372 = vmatprep.subr.bf16.mxu0 %v301
    %373 = vmatpush1.bf16.xpose.msra.mxu0 %v300
    %374 = vmatprep.subr.bf16.mxu0 %v307
    %375 = vmatpush1.bf16.xpose.msra.mxu0 %v306
    %376 = vmatprep.subr.bf16.mxu0 0
    %377 = vmatpush1.bf16.xpose.msra.mxu0 0
    %378 = vmatprep.subr.bf16.mxu0 0
    %379 = vmatpush1.bf16.xpose.msra.mxu0 0
    %380 = vmatprep.subr.bf16.mxu0 0
    %381 = vmatpush1.bf16.xpose.msra.mxu0 0
    %382 = vmatprep.subr.bf16.mxu0 0
    %383 = vmatpush1.bf16.xpose.msra.mxu0 0
    %384 = vmatprep.subr.bf16.mxu0 0
    %385 = vmatpush1.bf16.xpose.msra.mxu0 0
    %386 = vmatprep.subr.bf16.mxu0 0
    %387 = vmatpush1.bf16.xpose.msra.mxu0 0
    %388 = vmatprep.subr.bf16.mxu0 0
    %389 = vmatpush1.bf16.xpose.msra.mxu0 0
    %390 = vmatprep.subr.bf16.mxu0 0
    %391 = vmatpush1.bf16.xpose.msra.mxu0 0
    %392 = vmatprep.mubr.bf16.mxu0 %v109
    %393 = vmatmul.mubr.bf16.gmra.mrb[0].mxu0 %v108
    %v394 = vpop.f32.mrb[0].mxu0
    %v395 = vadd.f32 0.0, %v394
    %v396 = vpop.f32.mrb[0].mxu0
    %v397 = vpop.f32.mrb[0].mxu0
    %v398 = vpop.f32.mrb[0].mxu0
    %399 = vdwg.mxu0
    %400 = vmatprep.subr.bf16.mxu0 %v267
    %401 = vmatpush1.bf16.xpose.msra.mxu0 %v266
    %402 = vmatprep.subr.bf16.mxu0 %v273
    %403 = vmatpush1.bf16.xpose.msra.mxu0 %v272
    %404 = vmatprep.subr.bf16.mxu0 %v279
    %405 = vmatpush1.bf16.xpose.msra.mxu0 %v278
    %406 = vmatprep.subr.bf16.mxu0 %v285
    %407 = vmatpush1.bf16.xpose.msra.mxu0 %v284
    %408 = vmatprep.subr.bf16.mxu0 %v291
    %409 = vmatpush1.bf16.xpose.msra.mxu0 %v290
    %410 = vmatprep.subr.bf16.mxu0 %v297
    %411 = vmatpush1.bf16.xpose.msra.mxu0 %v296
    %412 = vmatprep.subr.bf16.mxu0 %v303
    %413 = vmatpush1.bf16.xpose.msra.mxu0 %v302
    %414 = vmatprep.subr.bf16.mxu0 %v309
    %415 = vmatpush1.bf16.xpose.msra.mxu0 %v308
    %416 = vmatprep.subr.bf16.mxu0 0
    %417 = vmatpush1.bf16.xpose.msra.mxu0 0
    %418 = vmatprep.subr.bf16.mxu0 0
    %419 = vmatpush1.bf16.xpose.msra.mxu0 0
    %420 = vmatprep.subr.bf16.mxu0 0
    %421 = vmatpush1.bf16.xpose.msra.mxu0 0
    %422 = vmatprep.subr.bf16.mxu0 0
    %423 = vmatpush1.bf16.xpose.msra.mxu0 0
    %424 = vmatprep.subr.bf16.mxu0 0
    %425 = vmatpush1.bf16.xpose.msra.mxu0 0
    %426 = vmatprep.subr.bf16.mxu0 0
    %427 = vmatpush1.bf16.xpose.msra.mxu0 0
    %428 = vmatprep.subr.bf16.mxu0 0
    %429 = vmatpush1.bf16.xpose.msra.mxu0 0
    %430 = vmatprep.subr.bf16.mxu0 0
    %431 = vmatpush1.bf16.xpose.msra.mxu0 0
    %432 = vmatprep.mubr.bf16.mxu0 %v111
    %433 = vmatmul.mubr.bf16.gmra.mrb[0].mxu0 %v110
    %v434 = vpop.f32.mrb[0].mxu0
    %v435 = vadd.f32 %v395, %v434
    %v436 = vpop.f32.mrb[0].mxu0
    %v437 = vpop.f32.mrb[0].mxu0
    %v438 = vpop.f32.mrb[0].mxu0
    %439 = vdwg.mxu0
    %440 = vmatprep.subr.bf16.mxu0 %v269
    %441 = vmatpush1.bf16.xpose.msra.mxu0 %v268
    %442 = vmatprep.subr.bf16.mxu0 %v275
    %443 = vmatpush1.bf16.xpose.msra.mxu0 %v274
    %444 = vmatprep.subr.bf16.mxu0 %v281
    %445 = vmatpush1.bf16.xpose.msra.mxu0 %v280
    %446 = vmatprep.subr.bf16.mxu0 %v287
    %447 = vmatpush1.bf16.xpose.msra.mxu0 %v286
    %448 = vmatprep.subr.bf16.mxu0 %v293
    %449 = vmatpush1.bf16.xpose.msra.mxu0 %v292
    %450 = vmatprep.subr.bf16.mxu0 %v299
    %451 = vmatpush1.bf16.xpose.msra.mxu0 %v298
    %452 = vmatprep.subr.bf16.mxu0 %v305
    %453 = vmatpush1.bf16.xpose.msra.mxu0 %v304
    %454 = vmatprep.subr.bf16.mxu0 %v311
    %455 = vmatpush1.bf16.xpose.msra.mxu0 %v310
    %456 = vmatprep.subr.bf16.mxu0 0
    %457 = vmatpush1.bf16.xpose.msra.mxu0 0
    %458 = vmatprep.subr.bf16.mxu0 0
    %459 = vmatpush1.bf16.xpose.msra.mxu0 0
    %460 = vmatprep.subr.bf16.mxu0 0
    %461 = vmatpush1.bf16.xpose.msra.mxu0 0
    %462 = vmatprep.subr.bf16.mxu0 0
    %463 = vmatpush1.bf16.xpose.msra.mxu0 0
    %464 = vmatprep.subr.bf16.mxu0 0
    %465 = vmatpush1.bf16.xpose.msra.mxu0 0
    %466 = vmatprep.subr.bf16.mxu0 0
    %467 = vmatpush1.bf16.xpose.msra.mxu0 0
    %468 = vmatprep.subr.bf16.mxu0 0
    %469 = vmatpush1.bf16.xpose.msra.mxu0 0
    %470 = vmatprep.subr.bf16.mxu0 0
    %471 = vmatpush1.bf16.xpose.msra.mxu0 0
    %472 = vmatprep.mubr.bf16.mxu0 %v113
    %473 = vmatmul.mubr.bf16.gmra.mrb[0].mxu0 %v112
    %v474 = vpop.f32.mrb[0].mxu0
    %v475 = vadd.f32 %v435, %v474
    %v476 = vpop.f32.mrb[0].mxu0
    %v477 = vpop.f32.mrb[0].mxu0
    %v478 = vpop.f32.mrb[0].mxu0
    %479 = vdwg.mxu0
    %v480 = vadd.f32 %v47, %v475
    %481 = vst [vmem:[#allocation2] sm:$0xff] %v480
    // Predicated region
    $region26: #{tpu_custom_call.1} parent=1 // pred_check
      %p482 = pneg %p42
    $region27: #{tpu_custom_call.1} parent=1 // pred_check_branch
      %484 = sbr.rel (%p482) target = $region29
    $region28: #{tpu_custom_call.1} parent=1 // pred_region
      %v485 = vld [vmem:[#allocation2] sm:$0xff]
      %v486 = vld [vmem:[%s2] sm:$0x1]
      %v488 = vlaneseq
      %v489 = vshrl.u32 %v488, 7
      %v490 = vsub.s32 0, %v489
      %v491 = vrot.slane %v486, %v490
      %v493 = vadd.f32 %v485, %v491
      %494 = vst [vmem:[#allocation8] sm:$0xff] %v493
    $region29: #{tpu_custom_call.1} parent=1 // pred_fallthru
      _
    // Predicated region
    $region30: #{tpu_custom_call.1} parent=1 // pred_check
      _
    $region31: #{tpu_custom_call.1} parent=1 // pred_check_branch
      %496 = sbr.rel (0) target = $region33
    $region32: #{tpu_custom_call.1} parent=1 // pred_region
      %s498 = ssub.s32 128, 128
      %499 = vsyncadd [#allocation5], %s498
      %s501 = sshll.u32 [#allocation8], 4
      %s502 = int_to_ptr.vmem [resolvable:$true] %s501
      %504 = dma.vmem_to_hbm [thread:$0]  %s502, 128, %s3, [#allocation5]
    $region33: #{tpu_custom_call.1} parent=1 // pred_fallthru
      _
    // Predicated region
    $region34: #{tpu_custom_call.1} parent=1 // pred_check
      _
    $region35: #{tpu_custom_call.1} parent=1 // pred_check_branch
      %506 = sbr.rel (0) target = $region37
    $region36: #{tpu_custom_call.1} parent=1 // pred_region
      %507 = dma.done [#allocation5], 128
    $region37: #{tpu_custom_call.1} parent=1 // pred_fallthru
      _
    %508 = vsyncpa [#allocation4], 1
    %509 = vsyncpa [#allocation7], 1
    %510 = vsyncpa [#allocation5], 1

</llo_original>
